<compile_context>
chip_gen: v7x
topology: tpu7x:2x2x1
jax: 0.10.0
libtpu: 0.0.40
codegen_flags: <defaults>
</compile_context>

<pallas_src>
import functools

import numpy as np
import jax
import jax.numpy as jnp
from jax.experimental import pallas as pl
from jax.experimental.pallas import tpu as pltpu

P = 4            # spatial stride of the synthetic backbone stem
HIDDEN = 32      # hidden width of the synthetic backbone
NUM_CLASSES = 6
LANE_TILE = 128  # spatial (lane) tile for the head kernel


def _round_up(x, m):
    return ((x + m - 1) // m) * m


# --------------------------------------------------------------------------- #
# Kernel A: fused patchify-conv stem + ReLU + 1x1 classifier (all scales)
# --------------------------------------------------------------------------- #
def _head_kernel(xpt_ref, w1t_ref, b1_ref, w2t_ref, b2_ref, o_ref):
    # xpt: (K, TM) bf16   w1t: (H, K) bf16   b1: (H, 1) f32
    # w2t: (NC, H) bf16   b2: (NC, 1) f32    o: (NC, TM) f32
    h = jnp.dot(w1t_ref[...], xpt_ref[...], preferred_element_type=jnp.float32)
    h = jnp.maximum(h + b1_ref[...], 0.0)                      # f32 epilogue
    logits = jnp.dot(w2t_ref[...], h.astype(jnp.bfloat16),
                     preferred_element_type=jnp.float32) + b2_ref[...]
    o_ref[...] = logits.astype(o_ref.dtype)


def _multi_scale_head(xpt_list, params):
    """Run the synthetic backbone head on all scales in a single pallas_call."""
    w1t, b1, w2t, b2 = params
    k = xpt_list[0].shape[0]
    hid = w1t.shape[0]
    nc = w2t.shape[0]

    m_sizes = [x.shape[1] for x in xpt_list]
    m_total = sum(m_sizes)
    mp = _round_up(m_total, LANE_TILE)

    xpt = jnp.concatenate(xpt_list, axis=1)
    if mp != m_total:
        xpt = jnp.pad(xpt, ((0, 0), (0, mp - m_total)))        # lane-dense pad

    logits = pl.pallas_call(
        _head_kernel,
        out_shape=jax.ShapeDtypeStruct((nc, mp), jnp.float32),
        grid_spec=pltpu.PrefetchScalarGridSpec(
            num_scalar_prefetch=0,
            grid=(mp // LANE_TILE,),
            in_specs=[
                pl.BlockSpec((k, LANE_TILE), lambda m: (0, m)),
                pl.BlockSpec((hid, k), lambda m: (0, 0)),       # weights resident
                pl.BlockSpec((hid, 1), lambda m: (0, 0)),
                pl.BlockSpec((nc, hid), lambda m: (0, 0)),
                pl.BlockSpec((nc, 1), lambda m: (0, 0)),
            ],
            out_specs=pl.BlockSpec((nc, LANE_TILE), lambda m: (0, m)),
        ),
        compiler_params=pltpu.CompilerParams(
            dimension_semantics=("parallel",)),
    )(xpt, w1t, b1, w2t, b2)

    # split the concatenated spatial axis back into the three scales
    out, off = [], 0
    for ms in m_sizes:
        out.append(logits[:, off:off + ms])
        off += ms
    return out


# --------------------------------------------------------------------------- #
# Kernel B: fused separable bilinear upsample (0.75x, 0.50x) + max fusion
# --------------------------------------------------------------------------- #
def _fuse_kernel(xf_ref, x75_ref, x50_ref,
                 ah75_ref, aw75t_ref, ah50_ref, aw50t_ref,
                 up75_ref, fused_ref):
    xf = xf_ref[0]                                              # (Ho, Wo)
    # y = A_h @ X @ A_w^T  (both contractions fused, no HBM transpose)
    t75 = jnp.dot(x75_ref[0], aw75t_ref[...], preferred_element_type=jnp.float32)
    y75 = jnp.dot(ah75_ref[...], t75, preferred_element_type=jnp.float32)
    t50 = jnp.dot(x50_ref[0], aw50t_ref[...], preferred_element_type=jnp.float32)
    y50 = jnp.dot(ah50_ref[...], t50, preferred_element_type=jnp.float32)
    up75_ref[0] = y75
    fused_ref[0] = jnp.maximum(jnp.maximum(xf, y75), y50)       # torch.max chain


def _interp_matrix(out_size, in_size):
    """align_corners=True bilinear interpolation matrix (static, numpy)."""
    a = np.zeros((out_size, in_size), np.float32)
    if out_size == 1:
        src = np.zeros((1,), np.float64)
    else:
        src = np.arange(out_size, dtype=np.float64) * ((in_size - 1) / (out_size - 1))
    i0 = np.clip(np.floor(src).astype(np.int64), 0, in_size - 1)
    i1 = np.minimum(i0 + 1, in_size - 1)
    w1 = (src - i0).astype(np.float32)
    w0 = 1.0 - w1
    for r in range(out_size):
        a[r, i0[r]] += w0[r]
        a[r, i1[r]] += w1[r]
    return jnp.asarray(a)


def _upsample_and_fuse(xf, x75, x50):
    """xf/(x75,x50): (N*NC, Hs, Ws) channel-major maps; returns (up75, fused)."""
    b3, ho, wo = xf.shape
    _, h75, w75 = x75.shape
    _, h50, w50 = x50.shape
    ah75 = _interp_matrix(ho, h75)
    aw75t = _interp_matrix(wo, w75).T
    ah50 = _interp_matrix(ho, h50)
    aw50t = _interp_matrix(wo, w50).T

    return pl.pallas_call(
        _fuse_kernel,
        out_shape=(jax.ShapeDtypeStruct((b3, ho, wo), jnp.float32),
                   jax.ShapeDtypeStruct((b3, ho, wo), jnp.float32)),
        grid_spec=pltpu.PrefetchScalarGridSpec(
            num_scalar_prefetch=0,
            grid=(b3,),
            in_specs=[
                pl.BlockSpec((1, ho, wo), lambda b: (b, 0, 0)),
                pl.BlockSpec((1, h75, w75), lambda b: (b, 0, 0)),
                pl.BlockSpec((1, h50, w50), lambda b: (b, 0, 0)),
                pl.BlockSpec((ho, h75), lambda b: (0, 0)),      # interp mats resident
                pl.BlockSpec((w75, wo), lambda b: (0, 0)),
                pl.BlockSpec((ho, h50), lambda b: (0, 0)),
                pl.BlockSpec((w50, wo), lambda b: (0, 0)),
            ],
            out_specs=[
                pl.BlockSpec((1, ho, wo), lambda b: (b, 0, 0)),
                pl.BlockSpec((1, ho, wo), lambda b: (b, 0, 0)),
            ],
        ),
        compiler_params=pltpu.CompilerParams(
            dimension_semantics=("parallel",)),
    )(xf, x75, x50, ah75, aw75t, ah50, aw50t)


# --------------------------------------------------------------------------- #
# Host-side layout glue (NCHW module boundary, channel-major internal layout)
# --------------------------------------------------------------------------- #
def _patchify_t(x_nchw):
    """NCHW -> (C*P*P, N*Ho*Wo) bf16 patch matrix (spatial on the lane axis)."""
    n, c, h, w = x_nchw.shape
    ho, wo = h // P, w // P
    xp = x_nchw.reshape(n, c, ho, P, wo, P)
    xp = jnp.transpose(xp, (1, 3, 5, 0, 2, 4))                  # (C,P,P,N,Ho,Wo)
    return xp.reshape(c * P * P, n * ho * wo).astype(jnp.bfloat16)


# --------------------------------------------------------------------------- #
# DeepLab.forward(input, input_75, input_50) -> [x, interp(x75), x50, fused_max]
# --------------------------------------------------------------------------- #
@jax.jit
def deeplab_forward(inp, inp_75, inp_50, params):
    # TODO(synk): self.Scale is a ResNet-101(Bottleneck [3,4,23,3]) + ASPP head
    # defined outside this module (loads cfg.TRAIN.PRETRAINED_MODEL, frozen BN);
    # it is replaced by a synthetic stride-4 patchify conv + ReLU + 1x1
    # classifier playing the same role (image -> per-class logits, stride 4).
    n = inp.shape[0]
    shapes, xpt_list = [], []
    for x in (inp, inp_75, inp_50):
        shapes.append((x.shape[2] // P, x.shape[3] // P))
        xpt_list.append(_patchify_t(x))

    # Kernel A: all three scales in one call, weights resident in VMEM.
    logits = _multi_scale_head(xpt_list, params)                # [(NC, N*Hs*Ws)]
    nc = logits[0].shape[0]

    # pure reshapes (no transpose): (NC, N*Hs*Ws) -> (NC*N, Hs, Ws)
    maps = [l.reshape(nc * n, hs, ws) for l, (hs, ws) in zip(logits, shapes)]
    xf, x75, x50 = maps
    ho, wo = shapes[0]

    # Kernel B: both upsamples + both torch.max fusions.
    up75, fused = _upsample_and_fuse(xf, x75, x50)

    def to_nchw(t, hh, ww):                                     # boundary layout only
        return jnp.transpose(t.reshape(nc, n, hh, ww), (1, 0, 2, 3))

    return [to_nchw(xf, ho, wo),            # out[0] = Scale(input)
            to_nchw(up75, ho, wo),          # out[1] = interp(Scale(input_75))
            to_nchw(x50, *shapes[2]),       # out[2] = Scale(input_50) (no interp)
            to_nchw(fused, ho, wo)]         # out[3] = max(max(x, interp75), interp50)


def init_params(key, in_ch, hidden, num_classes):
    k1, k2 = jax.random.split(key)
    kdim = in_ch * P * P
    # transposed (output-major) weights, bf16 for the MXU; biases stay f32 columns
    w1t = (jax.random.normal(k1, (hidden, kdim), jnp.float32) * 0.05).astype(jnp.bfloat16)
    b1 = jnp.zeros((hidden, 1), jnp.float32)
    # classifier initialised like _init_weights: normal(0, 0.01), zero bias
    w2t = (jax.random.normal(k2, (num_classes, hidden), jnp.float32) * 0.01).astype(jnp.bfloat16)
    b2 = jnp.zeros((num_classes, 1), jnp.float32)
    return (w1t, b1, w2t, b2)


if __name__ == "__main__":
    key = jax.random.PRNGKey(0)
    kx, k75, k50, kp = jax.random.split(key, 4)

    N, C, H, W = 2, 3, 16, 16
    x = jax.random.normal(kx, (N, C, H, W), jnp.float32)          # full scale
    x75 = jax.random.normal(k75, (N, C, 12, 12), jnp.float32)     # 0.75 scale
    x50 = jax.random.normal(k50, (N, C, 8, 8), jnp.float32)       # 0.50 scale

    params = init_params(kp, C, HIDDEN, NUM_CLASSES)

    outs = deeplab_forward(x, x75, x50, params)
    for o in outs:
        o.block_until_ready()

    assert outs[0].shape == (N, NUM_CLASSES, 4, 4)
    assert outs[1].shape == (N, NUM_CLASSES, 4, 4)
    assert outs[2].shape == (N, NUM_CLASSES, 2, 2)
    assert outs[3].shape == (N, NUM_CLASSES, 4, 4)
    assert all(bool(jnp.all(jnp.isfinite(o))) for o in outs)
    print("KERNEL_OK")
</pallas_src>

<mosaic_0001>
module attributes {stable_mosaic.version = 11 : i64} {
  func.func @_head_kernel(%arg0: i32, %arg1: memref<48x128xbf16, #tpu.memory_space<vmem>>, %arg2: memref<32x48xbf16, #tpu.memory_space<vmem>>, %arg3: memref<32x1xf32, #tpu.memory_space<vmem>>, %arg4: memref<6x32xbf16, #tpu.memory_space<vmem>>, %arg5: memref<6x1xf32, #tpu.memory_space<vmem>>, %arg6: memref<6x128xf32, #tpu.memory_space<vmem>>) attributes {dimension_semantics = [#tpu.dimension_semantics<parallel>], iteration_bounds = array<i64: 1>, scalar_prefetch = 0 : i64, scratch_operands = 0 : i64, tpu.core_type = #tpu.core_type<tc>, window_params = [{transform_indices = @transform_0, window_bounds = array<i64: 48, 128>}, {pipeline_mode = #tpu.pipeline_mode<synchronous>, transform_indices = @transform_1, window_bounds = array<i64: 32, 48>}, {pipeline_mode = #tpu.pipeline_mode<synchronous>, transform_indices = @transform_2, window_bounds = array<i64: 32, 1>}, {pipeline_mode = #tpu.pipeline_mode<synchronous>, transform_indices = @transform_3, window_bounds = array<i64: 6, 32>}, {pipeline_mode = #tpu.pipeline_mode<synchronous>, transform_indices = @transform_4, window_bounds = array<i64: 6, 1>}, {transform_indices = @transform_5, window_bounds = array<i64: 6, 128>}]} {
    %c0 = arith.constant 0 : index
    %c0_0 = arith.constant 0 : index
    %0 = vector.load %arg2[%c0, %c0_0] : memref<32x48xbf16, #tpu.memory_space<vmem>>, vector<32x48xbf16>
    %c0_1 = arith.constant 0 : index
    %c0_2 = arith.constant 0 : index
    %1 = vector.load %arg1[%c0_1, %c0_2] : memref<48x128xbf16, #tpu.memory_space<vmem>>, vector<48x128xbf16>
    %cst = arith.constant dense<0.000000e+00> : vector<32x128xf32>
    %2 = tpu.matmul %0, %1, %cst {dimension_numbers = #tpu.dot_dimension_numbers<[1], [0], [0], [1], [0, 0, 1, 1], [], []>} : vector<32x48xbf16>, vector<48x128xbf16>, vector<32x128xf32> -> vector<32x128xf32>
    %c0_3 = arith.constant 0 : index
    %c0_4 = arith.constant 0 : index
    %3 = vector.load %arg3[%c0_3, %c0_4] : memref<32x1xf32, #tpu.memory_space<vmem>>, vector<32x1xf32>
    %4 = vector.broadcast %3 : vector<32x1xf32> to vector<32x128xf32>
    %5 = arith.addf %2, %4 : vector<32x128xf32>
    %cst_5 = arith.constant 0.000000e+00 : f32
    %6 = vector.broadcast %cst_5 : f32 to vector<32x128xf32>
    %7 = arith.maximumf %5, %6 : vector<32x128xf32>
    %c0_6 = arith.constant 0 : index
    %c0_7 = arith.constant 0 : index
    %8 = vector.load %arg4[%c0_6, %c0_7] : memref<6x32xbf16, #tpu.memory_space<vmem>>, vector<6x32xbf16>
    %9 = arith.truncf %7 : vector<32x128xf32> to vector<32x128xbf16>
    %cst_8 = arith.constant dense<0.000000e+00> : vector<6x128xf32>
    %10 = tpu.matmul %8, %9, %cst_8 {dimension_numbers = #tpu.dot_dimension_numbers<[1], [0], [0], [1], [0, 0, 1, 1], [], []>} : vector<6x32xbf16>, vector<32x128xbf16>, vector<6x128xf32> -> vector<6x128xf32>
    %c0_9 = arith.constant 0 : index
    %c0_10 = arith.constant 0 : index
    %11 = vector.load %arg5[%c0_9, %c0_10] : memref<6x1xf32, #tpu.memory_space<vmem>>, vector<6x1xf32>
    %12 = vector.broadcast %11 : vector<6x1xf32> to vector<6x128xf32>
    %13 = arith.addf %10, %12 : vector<6x128xf32>
    %c0_11 = arith.constant 0 : index
    %c0_12 = arith.constant 0 : index
    %14 = vector.load %arg6[%c0_11, %c0_12] : memref<6x128xf32, #tpu.memory_space<vmem>>, vector<6x128xf32>
    tpu.vector_store %arg6[%c0_11, %c0_12], %13 {strides = array<i32>} : memref<6x128xf32, #tpu.memory_space<vmem>>, vector<6x128xf32>,
    return
  }
  func.func @transform_0(%arg0: i32) -> (i32, i32) {
    %c0_i32 = arith.constant 0 : i32
    %c0_i32_0 = arith.constant 0 : i32
    return %c0_i32, %arg0 : i32, i32
  }
  func.func @transform_1(%arg0: i32) -> (i32, i32) {
    %c0_i32 = arith.constant 0 : i32
    %c0_i32_0 = arith.constant 0 : i32
    %c0_i32_1 = arith.constant 0 : i32
    return %c0_i32, %c0_i32_0 : i32, i32
  }
  func.func @transform_2(%arg0: i32) -> (i32, i32) {
    %c0_i32 = arith.constant 0 : i32
    %c0_i32_0 = arith.constant 0 : i32
    %c0_i32_1 = arith.constant 0 : i32
    return %c0_i32, %c0_i32_0 : i32, i32
  }
  func.func @transform_3(%arg0: i32) -> (i32, i32) {
    %c0_i32 = arith.constant 0 : i32
    %c0_i32_0 = arith.constant 0 : i32
    %c0_i32_1 = arith.constant 0 : i32
    return %c0_i32, %c0_i32_0 : i32, i32
  }
  func.func @transform_4(%arg0: i32) -> (i32, i32) {
    %c0_i32 = arith.constant 0 : i32
    %c0_i32_0 = arith.constant 0 : i32
    %c0_i32_1 = arith.constant 0 : i32
    return %c0_i32, %c0_i32_0 : i32, i32
  }
  func.func @transform_5(%arg0: i32) -> (i32, i32) {
    %c0_i32 = arith.constant 0 : i32
    %c0_i32_0 = arith.constant 0 : i32
    return %c0_i32, %arg0 : i32, i32
  }
}

module attributes {stable_mosaic.version = 11 : i64} {
  func.func @_fuse_kernel(%arg0: i32, %arg1: memref<1x4x4xf32, #tpu.memory_space<vmem>>, %arg2: memref<1x3x3xf32, #tpu.memory_space<vmem>>, %arg3: memref<1x2x2xf32, #tpu.memory_space<vmem>>, %arg4: memref<4x3xf32, #tpu.memory_space<vmem>>, %arg5: memref<3x4xf32, #tpu.memory_space<vmem>>, %arg6: memref<4x2xf32, #tpu.memory_space<vmem>>, %arg7: memref<2x4xf32, #tpu.memory_space<vmem>>, %arg8: memref<1x4x4xf32, #tpu.memory_space<vmem>>, %arg9: memref<1x4x4xf32, #tpu.memory_space<vmem>>) attributes {dimension_semantics = [#tpu.dimension_semantics<parallel>], iteration_bounds = array<i64: 12>, scalar_prefetch = 0 : i64, scratch_operands = 0 : i64, tpu.core_type = #tpu.core_type<tc>, window_params = [{transform_indices = @transform_0, window_bounds = array<i64: 1, 4, 4>}, {transform_indices = @transform_1, window_bounds = array<i64: 1, 3, 3>}, {transform_indices = @transform_2, window_bounds = array<i64: 1, 2, 2>}, {pipeline_mode = #tpu.pipeline_mode<synchronous>, transform_indices = @transform_3, window_bounds = array<i64: 4, 3>}, {pipeline_mode = #tpu.pipeline_mode<synchronous>, transform_indices = @transform_4, window_bounds = array<i64: 3, 4>}, {pipeline_mode = #tpu.pipeline_mode<synchronous>, transform_indices = @transform_5, window_bounds = array<i64: 4, 2>}, {pipeline_mode = #tpu.pipeline_mode<synchronous>, transform_indices = @transform_6, window_bounds = array<i64: 2, 4>}, {transform_indices = @transform_7, window_bounds = array<i64: 1, 4, 4>}, {transform_indices = @transform_8, window_bounds = array<i64: 1, 4, 4>}]} {
    %c0 = arith.constant 0 : index
    %c0_0 = arith.constant 0 : index
    %c0_1 = arith.constant 0 : index
    %0 = vector.load %arg1[%c0, %c0_0, %c0_1] : memref<1x4x4xf32, #tpu.memory_space<vmem>>, vector<1x4x4xf32>
    %1 = vector.shape_cast %0 : vector<1x4x4xf32> to vector<4x4xf32>
    %c0_2 = arith.constant 0 : index
    %c0_3 = arith.constant 0 : index
    %c0_4 = arith.constant 0 : index
    %2 = vector.load %arg2[%c0_2, %c0_3, %c0_4] : memref<1x3x3xf32, #tpu.memory_space<vmem>>, vector<1x3x3xf32>
    %3 = vector.shape_cast %2 : vector<1x3x3xf32> to vector<3x3xf32>
    %c0_5 = arith.constant 0 : index
    %c0_6 = arith.constant 0 : index
    %4 = vector.load %arg5[%c0_5, %c0_6] : memref<3x4xf32, #tpu.memory_space<vmem>>, vector<3x4xf32>
    %cst = arith.constant dense<0.000000e+00> : vector<3x4xf32>
    %5 = tpu.matmul %3, %4, %cst {dimension_numbers = #tpu.dot_dimension_numbers<[1], [0], [0], [1], [0, 0, 1, 1], [], []>} : vector<3x3xf32>, vector<3x4xf32>, vector<3x4xf32> -> vector<3x4xf32>
    %c0_7 = arith.constant 0 : index
    %c0_8 = arith.constant 0 : index
    %6 = vector.load %arg4[%c0_7, %c0_8] : memref<4x3xf32, #tpu.memory_space<vmem>>, vector<4x3xf32>
    %cst_9 = arith.constant dense<0.000000e+00> : vector<4x4xf32>
    %7 = tpu.matmul %6, %5, %cst_9 {dimension_numbers = #tpu.dot_dimension_numbers<[1], [0], [0], [1], [0, 0, 1, 1], [], []>} : vector<4x3xf32>, vector<3x4xf32>, vector<4x4xf32> -> vector<4x4xf32>
    %c0_10 = arith.constant 0 : index
    %c0_11 = arith.constant 0 : index
    %c0_12 = arith.constant 0 : index
    %8 = vector.load %arg3[%c0_10, %c0_11, %c0_12] : memref<1x2x2xf32, #tpu.memory_space<vmem>>, vector<1x2x2xf32>
    %9 = vector.shape_cast %8 : vector<1x2x2xf32> to vector<2x2xf32>
    %c0_13 = arith.constant 0 : index
    %c0_14 = arith.constant 0 : index
    %10 = vector.load %arg7[%c0_13, %c0_14] : memref<2x4xf32, #tpu.memory_space<vmem>>, vector<2x4xf32>
    %cst_15 = arith.constant dense<0.000000e+00> : vector<2x4xf32>
    %11 = tpu.matmul %9, %10, %cst_15 {dimension_numbers = #tpu.dot_dimension_numbers<[1], [0], [0], [1], [0, 0, 1, 1], [], []>} : vector<2x2xf32>, vector<2x4xf32>, vector<2x4xf32> -> vector<2x4xf32>
    %c0_16 = arith.constant 0 : index
    %c0_17 = arith.constant 0 : index
    %12 = vector.load %arg6[%c0_16, %c0_17] : memref<4x2xf32, #tpu.memory_space<vmem>>, vector<4x2xf32>
    %cst_18 = arith.constant dense<0.000000e+00> : vector<4x4xf32>
    %13 = tpu.matmul %12, %11, %cst_18 {dimension_numbers = #tpu.dot_dimension_numbers<[1], [0], [0], [1], [0, 0, 1, 1], [], []>} : vector<4x2xf32>, vector<2x4xf32>, vector<4x4xf32> -> vector<4x4xf32>
    %c0_19 = arith.constant 0 : index
    %c0_20 = arith.constant 0 : index
    %c0_21 = arith.constant 0 : index
    %14 = vector.load %arg8[%c0_19, %c0_20, %c0_21] : memref<1x4x4xf32, #tpu.memory_space<vmem>>, vector<1x4x4xf32>
    %15 = vector.shape_cast %14 : vector<1x4x4xf32> to vector<4x4xf32>
    %16 = vector.shape_cast %7 : vector<4x4xf32> to vector<1x4x4xf32>
    tpu.vector_store %arg8[%c0_19, %c0_20, %c0_21], %16 {strides = array<i32>} : memref<1x4x4xf32, #tpu.memory_space<vmem>>, vector<1x4x4xf32>,
    %17 = arith.maximumf %1, %7 : vector<4x4xf32>
    %18 = arith.maximumf %17, %13 : vector<4x4xf32>
    %c0_22 = arith.constant 0 : index
    %c0_23 = arith.constant 0 : index
    %c0_24 = arith.constant 0 : index
    %19 = vector.load %arg9[%c0_22, %c0_23, %c0_24] : memref<1x4x4xf32, #tpu.memory_space<vmem>>, vector<1x4x4xf32>
    %20 = vector.shape_cast %19 : vector<1x4x4xf32> to vector<4x4xf32>
    %21 = vector.shape_cast %18 : vector<4x4xf32> to vector<1x4x4xf32>
    tpu.vector_store %arg9[%c0_22, %c0_23, %c0_24], %21 {strides = array<i32>} : memref<1x4x4xf32, #tpu.memory_space<vmem>>, vector<1x4x4xf32>,
    return
  }
  func.func @transform_0(%arg0: i32) -> (i32, i32, i32) {
    %c0_i32 = arith.constant 0 : i32
    %c0_i32_0 = arith.constant 0 : i32
    %c0_i32_1 = arith.constant 0 : i32
    return %arg0, %c0_i32, %c0_i32_0 : i32, i32, i32
  }
  func.func @transform_1(%arg0: i32) -> (i32, i32, i32) {
    %c0_i32 = arith.constant 0 : i32
    %c0_i32_0 = arith.constant 0 : i32
    %c0_i32_1 = arith.constant 0 : i32
    return %arg0, %c0_i32, %c0_i32_0 : i32, i32, i32
  }
  func.func @transform_2(%arg0: i32) -> (i32, i32, i32) {
    %c0_i32 = arith.constant 0 : i32
    %c0_i32_0 = arith.constant 0 : i32
    %c0_i32_1 = arith.constant 0 : i32
    return %arg0, %c0_i32, %c0_i32_0 : i32, i32, i32
  }
  func.func @transform_3(%arg0: i32) -> (i32, i32) {
    %c0_i32 = arith.constant 0 : i32
    %c0_i32_0 = arith.constant 0 : i32
    %c0_i32_1 = arith.constant 0 : i32
    return %c0_i32, %c0_i32_0 : i32, i32
  }
  func.func @transform_4(%arg0: i32) -> (i32, i32) {
    %c0_i32 = arith.constant 0 : i32
    %c0_i32_0 = arith.constant 0 : i32
    %c0_i32_1 = arith.constant 0 : i32
    return %c0_i32, %c0_i32_0 : i32, i32
  }
  func.func @transform_5(%arg0: i32) -> (i32, i32) {
    %c0_i32 = arith.constant 0 : i32
    %c0_i32_0 = arith.constant 0 : i32
    %c0_i32_1 = arith.constant 0 : i32
    return %c0_i32, %c0_i32_0 : i32, i32
  }
  func.func @transform_6(%arg0: i32) -> (i32, i32) {
    %c0_i32 = arith.constant 0 : i32
    %c0_i32_0 = arith.constant 0 : i32
    %c0_i32_1 = arith.constant 0 : i32
    return %c0_i32, %c0_i32_0 : i32, i32
  }
  func.func @transform_7(%arg0: i32) -> (i32, i32, i32) {
    %c0_i32 = arith.constant 0 : i32
    %c0_i32_0 = arith.constant 0 : i32
    %c0_i32_1 = arith.constant 0 : i32
    return %arg0, %c0_i32, %c0_i32_0 : i32, i32, i32
  }
  func.func @transform_8(%arg0: i32) -> (i32, i32, i32) {
    %c0_i32 = arith.constant 0 : i32
    %c0_i32_0 = arith.constant 0 : i32
    %c0_i32_1 = arith.constant 0 : i32
    return %arg0, %c0_i32, %c0_i32_0 : i32, i32, i32
  }
}

</mosaic_0001>

<llo_original>
// kernel: deeplab_forward.2
$region0: #{deeplab_forward.2}
  #allocation0 [shape = 'u32[]', space=smem, size = 0x4, offset = 0x4, fixed_abs, tag = 'smem constant byte address 0x4 - core index']
  #allocation1 [shape = 'u32[144,128]{1,0:T(1,128)}', space=vmem, size = 0x12000, scoped, tag = 'internal scratch']
  %s0 = inlined_call_operand.vmem [shape: bf16[48,128], index: 0, kind: input, shape index: {}]
  %s1 = inlined_call_operand.vmem [shape: bf16[32,48], index: 1, kind: input, shape index: {}]
  %s2 = inlined_call_operand.vmem [shape: f32[32,1], index: 2, kind: input, shape index: {}]
  %s3 = inlined_call_operand.vmem [shape: bf16[6,32], index: 3, kind: input, shape index: {}]
  %s4 = inlined_call_operand.vmem [shape: f32[6,1], index: 4, kind: input, shape index: {}]
  %s5 = inlined_call_operand.vmem [shape: f32[6,128], index: 5, kind: output, shape index: {}]
  %s6 = sld [smem:[#allocation0]]
  $region30: #{deeplab_forward.2} parent=0
    _
  %s8 = ssub.s32 1, %s6
  %s9 = scalar_select 0, %s8, %s6
  // Predicated region
  $region2: #{deeplab_forward.2} parent=0 // pred_check
    _
  $region3: #{deeplab_forward.2} parent=0 // pred_check_branch
    %11 = sbr.rel (0) target = $region5
  $region4: #{deeplab_forward.2} parent=0 // pred_region
    _
  $region5: #{deeplab_forward.2} parent=0 // pred_fallthru
    _
  // Predicated region
  $region6: #{deeplab_forward.2} parent=0 // pred_check
    _
  $region7: #{deeplab_forward.2} parent=0 // pred_check_branch
    %13 = sbr.rel (0) target = $region9
  $region8: #{deeplab_forward.2} parent=0 // pred_region
    _
  $region9: #{deeplab_forward.2} parent=0 // pred_fallthru
    _
  // Predicated region
  $region10: #{deeplab_forward.2} parent=0 // pred_check
    _
  $region11: #{deeplab_forward.2} parent=0 // pred_check_branch
    %15 = sbr.rel (0) target = $region13
  $region12: #{deeplab_forward.2} parent=0 // pred_region
    _
  $region13: #{deeplab_forward.2} parent=0 // pred_fallthru
    _
  // Predicated region
  $region14: #{deeplab_forward.2} parent=0 // pred_check
    _
  $region15: #{deeplab_forward.2} parent=0 // pred_check_branch
    %17 = sbr.rel (0) target = $region17
  $region16: #{deeplab_forward.2} parent=0 // pred_region
    _
  $region17: #{deeplab_forward.2} parent=0 // pred_fallthru
    _
  // Predicated region
  $region18: #{deeplab_forward.2} parent=0 // pred_check
    _
  $region19: #{deeplab_forward.2} parent=0 // pred_check_branch
    %19 = sbr.rel (0) target = $region21
  $region20: #{deeplab_forward.2} parent=0 // pred_region
    _
  $region21: #{deeplab_forward.2} parent=0 // pred_fallthru
    _
  %v21 = vld [vmem:[%s1] sm:$0xf]
  %v22 = vld [vmem:[%s1 + $0x4] sm:$0xf]
  %v23 = vld [vmem:[%s1 + $0x8] sm:$0xf]
  %v24 = vld [vmem:[%s1 + $0xc] sm:$0xf]
  %v25 = vld [vmem:[%s0] sm:$0xf]
  %v26 = vld [vmem:[%s0 + $0x4] sm:$0xf]
  %v27 = vld [vmem:[%s0 + $0x8] sm:$0xf]
  %v28 = vld [vmem:[%s0 + $0xc] sm:$0xf]
  %v29 = vld [vmem:[%s0 + $0x10] sm:$0xf]
  %v30 = vld [vmem:[%s0 + $0x14] sm:$0xf]
  %v31 = vld [vmem:[%s2] sm:$0xff]
  %v32 = vld [vmem:[%s2 + $0x8] sm:$0xff]
  %v33 = vld [vmem:[%s2 + $0x10] sm:$0xff]
  %v34 = vld [vmem:[%s2 + $0x18] sm:$0xff]
  %36 = vset.pattern.permute.xlu0 0
  %37 = vperm.xlu0 %36, %v31
  %v38 = vpop.permute.xlu0 %37
  %41 = vset.pattern.permute.xlu0 0
  %42 = vperm.xlu0 %41, %v32
  %v43 = vpop.permute.xlu0 %42
  %46 = vset.pattern.permute.xlu0 0
  %47 = vperm.xlu0 %46, %v33
  %v48 = vpop.permute.xlu0 %47
  %51 = vset.pattern.permute.xlu0 0
  %52 = vperm.xlu0 %51, %v34
  %v53 = vpop.permute.xlu0 %52
  %v59 = vunpack.c.l.b16 %v21
  %v60 = vunpack.c.l.b16 %v22
  %v61 = vunpack.c.l.b16 %v23
  %v62 = vunpack.c.l.b16 %v24
  %v63 = vpack.c.b16 %v60, %v59
  %v64 = vpack.c.b16 %v62, %v61
  %v71 = vunpack.c.l.b16 %v25
  %v72 = vunpack.c.l.b16 %v26
  %v73 = vunpack.c.l.b16 %v27
  %v74 = vunpack.c.l.b16 %v28
  %v75 = vunpack.c.l.b16 %v29
  %v76 = vunpack.c.l.b16 %v30
  %v77 = vpack.c.b16 %v72, %v71
  %v78 = vpack.c.b16 %v74, %v73
  %v79 = vpack.c.b16 %v76, %v75
  %vm83 = vcmask 392192
  %v85 = vsel %vm83, %v63, 0
  %v88 = vsel %vm83, %v64, 0
  %90 = vmatprep.subr.bf16.mxu0 0
  %91 = vmatpush1.bf16.msra.mxu0 %v77
  %92 = vmatprep.subr.bf16.mxu0 0
  %93 = vmatpush1.bf16.msra.mxu0 %v78
  %94 = vmatprep.subr.bf16.mxu0 0
  %95 = vmatpush1.bf16.msra.mxu0 %v79
  %96 = vmatprep.subr.bf16.mxu0 0
  %97 = vmatpush1.bf16.msra.mxu0 0
  %98 = vmatprep.subr.bf16.mxu0 0
  %99 = vmatpush1.bf16.msra.mxu0 0
  %100 = vmatprep.subr.bf16.mxu0 0
  %101 = vmatpush1.bf16.msra.mxu0 0
  %102 = vmatprep.subr.bf16.mxu0 0
  %103 = vmatpush1.bf16.msra.mxu0 0
  %104 = vmatprep.subr.bf16.mxu0 0
  %105 = vmatpush1.bf16.msra.mxu0 0
  %106 = vmatprep.subr.bf16.mxu0 0
  %107 = vmatpush1.bf16.msra.mxu0 0
  %108 = vmatprep.subr.bf16.mxu0 0
  %109 = vmatpush1.bf16.msra.mxu0 0
  %110 = vmatprep.subr.bf16.mxu0 0
  %111 = vmatpush1.bf16.msra.mxu0 0
  %112 = vmatprep.subr.bf16.mxu0 0
  %113 = vmatpush1.bf16.msra.mxu0 0
  %114 = vmatprep.subr.bf16.mxu0 0
  %115 = vmatpush1.bf16.msra.mxu0 0
  %116 = vmatprep.subr.bf16.mxu0 0
  %117 = vmatpush1.bf16.msra.mxu0 0
  %118 = vmatprep.subr.bf16.mxu0 0
  %119 = vmatpush1.bf16.msra.mxu0 0
  %120 = vmatprep.subr.bf16.mxu0 0
  %121 = vmatpush1.bf16.msra.mxu0 0
  %122 = vmatprep.mubr.bf16.mxu0 0
  %123 = vmatmul.mubr.bf16.gmra.mrb[0].mxu0 %v85
  %v124 = vpop.f32.mrb[0].mxu0
  %v125 = vadd.f32 %v38, %v124
  %v126 = vpop.f32.mrb[0].mxu0
  %v127 = vpop.f32.mrb[0].mxu0
  %v128 = vadd.f32 %v43, %v127
  %v129 = vpop.f32.mrb[0].mxu0
  %130 = vmatprep.mubr.bf16.mxu0 0
  %131 = vmatmul.mubr.bf16.gmra.mrb[0].mxu0 %v88
  %v132 = vpop.f32.mrb[0].mxu0
  %v133 = vadd.f32 %v48, %v132
  %v134 = vpop.f32.mrb[0].mxu0
  %v135 = vpop.f32.mrb[0].mxu0
  %v136 = vadd.f32 %v53, %v135
  %v137 = vpop.f32.mrb[0].mxu0
  %138 = vdwg.mxu0
  %v139 = vmax.f32 %v125, 0.0
  %v140 = vmax.f32 %v128, 0.0
  %v141 = vmax.f32 %v133, 0.0
  %v142 = vmax.f32 %v136, 0.0
  %v143 = vld [vmem:[%s3] sm:$0x7]
  %v144 = vpack.c.bf16 %v140, %v139
  %v145 = vpack.c.bf16 %v142, %v141
  %v146 = vld [vmem:[%s4] sm:$0x3f]
  %148 = vset.pattern.permute.xlu0 0
  %149 = vperm.xlu0 %148, %v146
  %v150 = vpop.permute.xlu0 %149
  %vm152 = vcmask 261120
  %v154 = vsel %vm152, %v143, 0
  %156 = vmatprep.subr.bf16.mxu0 0
  %157 = vmatpush1.bf16.msra.mxu0 %v144
  %158 = vmatprep.subr.bf16.mxu0 0
  %159 = vmatpush1.bf16.msra.mxu0 %v145
  %160 = vmatprep.subr.bf16.mxu0 0
  %161 = vmatpush1.bf16.msra.mxu0 0
  %162 = vmatprep.subr.bf16.mxu0 0
  %163 = vmatpush1.bf16.msra.mxu0 0
  %164 = vmatprep.subr.bf16.mxu0 0
  %165 = vmatpush1.bf16.msra.mxu0 0
  %166 = vmatprep.subr.bf16.mxu0 0
  %167 = vmatpush1.bf16.msra.mxu0 0
  %168 = vmatprep.subr.bf16.mxu0 0
  %169 = vmatpush1.bf16.msra.mxu0 0
  %170 = vmatprep.subr.bf16.mxu0 0
  %171 = vmatpush1.bf16.msra.mxu0 0
  %172 = vmatprep.subr.bf16.mxu0 0
  %173 = vmatpush1.bf16.msra.mxu0 0
  %174 = vmatprep.subr.bf16.mxu0 0
  %175 = vmatpush1.bf16.msra.mxu0 0
  %176 = vmatprep.subr.bf16.mxu0 0
  %177 = vmatpush1.bf16.msra.mxu0 0
  %178 = vmatprep.subr.bf16.mxu0 0
  %179 = vmatpush1.bf16.msra.mxu0 0
  %180 = vmatprep.subr.bf16.mxu0 0
  %181 = vmatpush1.bf16.msra.mxu0 0
  %182 = vmatprep.subr.bf16.mxu0 0
  %183 = vmatpush1.bf16.msra.mxu0 0
  %184 = vmatprep.subr.bf16.mxu0 0
  %185 = vmatpush1.bf16.msra.mxu0 0
  %186 = vmatprep.subr.bf16.mxu0 0
  %187 = vmatpush1.bf16.msra.mxu0 0
  %188 = vmatprep.mubr.bf16.mxu0 0
  %189 = vmatmul.mubr.bf16.gmra.mrb[0].mxu0 %v154
  %v190 = vpop.f32.mrb[0].mxu0
  %v191 = vadd.f32 %v150, %v190
  %v192 = vpop.f32.mrb[0].mxu0
  %v193 = vpop.f32.mrb[0].mxu0
  %v194 = vpop.f32.mrb[0].mxu0
  %195 = vdwg.mxu0
  %196 = vst [vmem:[%s5] sm:$0x3f] %v191
  // Predicated region
  $region22: #{deeplab_forward.2} parent=0 // pred_check
    _
  $region23: #{deeplab_forward.2} parent=0 // pred_check_branch
    %198 = sbr.rel (0) target = $region25
  $region24: #{deeplab_forward.2} parent=0 // pred_region
    _
  $region25: #{deeplab_forward.2} parent=0 // pred_fallthru
    _
  // Predicated region
  $region26: #{deeplab_forward.2} parent=0 // pred_check
    _
  $region27: #{deeplab_forward.2} parent=0 // pred_check_branch
    %200 = sbr.rel (0) target = $region29
  $region28: #{deeplab_forward.2} parent=0 // pred_region
    _
  $region29: #{deeplab_forward.2} parent=0 // pred_fallthru
    _

// kernel: deeplab_forward.3
$region0: #{deeplab_forward.3}
  #allocation0 [shape = 'u32[]', space=smem, size = 0x4, offset = 0x4, fixed_abs, tag = 'smem constant byte address 0x4 - core index']
  #allocation1 [shape = 'u32[144,128]{1,0:T(1,128)}', space=vmem, size = 0x12000, scoped, tag = 'internal scratch']
  %s0 = inlined_call_operand.vmem [shape: f32[12,4,4], index: 0, kind: input, shape index: {}]
  %s1 = inlined_call_operand.vmem [shape: f32[12,3,3], index: 1, kind: input, shape index: {}]
  %s2 = inlined_call_operand.vmem [shape: f32[12,2,2], index: 2, kind: input, shape index: {}]
  %s3 = inlined_call_operand.vmem [shape: f32[4,3], index: 3, kind: input, shape index: {}]
  %s4 = inlined_call_operand.vmem [shape: f32[3,4], index: 4, kind: input, shape index: {}]
  %s5 = inlined_call_operand.vmem [shape: f32[4,2], index: 5, kind: input, shape index: {}]
  %s6 = inlined_call_operand.vmem [shape: f32[2,4], index: 6, kind: input, shape index: {}]
  %s7 = inlined_call_operand.vmem [shape: f32[12,4,4], index: 7, kind: output, shape index: {0}]
  %s8 = inlined_call_operand.vmem [shape: f32[12,4,4], index: 8, kind: output, shape index: {1}]
  %9 = xla_tuple %s7, %s8
  %s10 = sld [smem:[#allocation0]]
  $region69: #{deeplab_forward.3} parent=0
    _
  %s12 = ssub.s32 1, %s10
  %s13 = scalar_select 0, %s12, %s10
  loop: start=0, step=1, limit=14
  $region2: #{deeplab_forward.3} parent=0 // loop_pre_header
    _
  $region3: #{deeplab_forward.3} parent=0 // loop_header
    %s15 = sphi 0, %s19
    %p16 = scmp.ge.s32.totalorder %s15, 14
    %s25 = sphi 0, %s27
    %s28 = sphi 0, %s25
    %s29 = sphi 0, %s28
    %s45 = sphi 0, %s29
    %s51 = sphi 0, %s53
    %s54 = sphi 0, %s51
    %s55 = sphi 0, %s54
    %s71 = sphi 0, %s55
    %s77 = sphi 0, %s79
    %s80 = sphi 0, %s77
    %s81 = sphi 0, %s80
    %s97 = sphi 0, %s81
    %s101 = sphi 0, %s101
    %s103 = sphi 0, %s101
    %s104 = sphi 0, %s103
    %s118 = sphi 0, %s104
    %s122 = sphi 0, %s122
    %s124 = sphi 0, %s122
    %s125 = sphi 0, %s124
    %s139 = sphi 0, %s125
    %s143 = sphi 0, %s143
    %s145 = sphi 0, %s143
    %s146 = sphi 0, %s145
    %s160 = sphi 0, %s146
    %s164 = sphi 0, %s164
    %s166 = sphi 0, %s164
    %s167 = sphi 0, %s166
    %s181 = sphi 0, %s167
    %s187 = sphi 0, %s189
    %s190 = sphi 0, %s187
    %s191 = sphi 0, %s190
    %s207 = sphi 0, %s191
    %s213 = sphi 0, %s215
    %s216 = sphi 0, %s213
    %s217 = sphi 0, %s216
    %s233 = sphi 0, %s217
  $region4: #{deeplab_forward.3} parent=0 // loop_header_branch
    %18 = sbr.rel (%p16) target = $region8
  $region5: #{deeplab_forward.3} parent=0 // loop_body
    %s20 = ssub.s32 %s15, 1
    %s21 = ssub.s32 %s15, 2
    %s22 = sadd.s32 %s15, 1
    %s23 = ssub.s32 %s15, %s22
    %p24 = scmp.eq.s32.totalorder %s23, 0
    %s26 = sadd.s32 %s25, 1
    %s27 = scalar_select %p24, %s25, %s26
    %p30 = pneg %p24
    %p31 = scmp.eq.s32.totalorder %s15, 11
    %p32 = por %p30, %p31
    %p33 = scmp.ne.s32.totalorder %s25, %s28
    %p34 = scmp.eq.s32.totalorder %s15, 0
    %p35 = por %p33, %p34
    %p36 = scmp.ne.s32.totalorder %s25, %s28
    %p37 = scmp.eq.s32.totalorder %s20, 11
    %p38 = por %p36, %p37
    %p39 = scmp.ne.s32.totalorder %s28, %s29
    %p40 = scmp.eq.s32.totalorder %s20, 0
    %p41 = por %p39, %p40
    %p42 = scmp.ne.s32.totalorder %s28, %s29
    %p43 = scmp.eq.s32.totalorder %s21, 11
    %p44 = por %p42, %p43
    %p46 = scmp.ne.s32.totalorder %s29, %s45
    %p47 = scmp.eq.s32.totalorder %s21, 0
    %p48 = por %p46, %p47
    %s49 = ssub.s32 %s15, %s22
    %p50 = scmp.eq.s32.totalorder %s49, 0
    %s52 = sadd.s32 %s51, 1
    %s53 = scalar_select %p50, %s51, %s52
    %p56 = pneg %p50
    %p57 = scmp.eq.s32.totalorder %s15, 11
    %p58 = por %p56, %p57
    %p59 = scmp.ne.s32.totalorder %s51, %s54
    %p60 = scmp.eq.s32.totalorder %s15, 0
    %p61 = por %p59, %p60
    %p62 = scmp.ne.s32.totalorder %s51, %s54
    %p63 = scmp.eq.s32.totalorder %s20, 11
    %p64 = por %p62, %p63
    %p65 = scmp.ne.s32.totalorder %s54, %s55
    %p66 = scmp.eq.s32.totalorder %s20, 0
    %p67 = por %p65, %p66
    %p68 = scmp.ne.s32.totalorder %s54, %s55
    %p69 = scmp.eq.s32.totalorder %s21, 11
    %p70 = por %p68, %p69
    %p72 = scmp.ne.s32.totalorder %s55, %s71
    %p73 = scmp.eq.s32.totalorder %s21, 0
    %p74 = por %p72, %p73
    %s75 = ssub.s32 %s15, %s22
    %p76 = scmp.eq.s32.totalorder %s75, 0
    %s78 = sadd.s32 %s77, 1
    %s79 = scalar_select %p76, %s77, %s78
    %p82 = pneg %p76
    %p83 = scmp.eq.s32.totalorder %s15, 11
    %p84 = por %p82, %p83
    %p85 = scmp.ne.s32.totalorder %s77, %s80
    %p86 = scmp.eq.s32.totalorder %s15, 0
    %p87 = por %p85, %p86
    %p88 = scmp.ne.s32.totalorder %s77, %s80
    %p89 = scmp.eq.s32.totalorder %s20, 11
    %p90 = por %p88, %p89
    %p91 = scmp.ne.s32.totalorder %s80, %s81
    %p92 = scmp.eq.s32.totalorder %s20, 0
    %p93 = por %p91, %p92
    %p94 = scmp.ne.s32.totalorder %s80, %s81
    %p95 = scmp.eq.s32.totalorder %s21, 11
    %p96 = por %p94, %p95
    %p98 = scmp.ne.s32.totalorder %s81, %s97
    %p99 = scmp.eq.s32.totalorder %s21, 0
    %p100 = por %p98, %p99
    %s102 = sadd.s32 %s101, 1
    %p105 = scmp.eq.s32.totalorder %s15, 11
    %p106 = scmp.ne.s32.totalorder %s101, %s103
    %p107 = scmp.eq.s32.totalorder %s15, 0
    %p108 = por %p106, %p107
    %p109 = scmp.ne.s32.totalorder %s101, %s103
    %p110 = scmp.eq.s32.totalorder %s20, 11
    %p111 = por %p109, %p110
    %p112 = scmp.ne.s32.totalorder %s103, %s104
    %p113 = scmp.eq.s32.totalorder %s20, 0
    %p114 = por %p112, %p113
    %p115 = scmp.ne.s32.totalorder %s103, %s104
    %p116 = scmp.eq.s32.totalorder %s21, 11
    %p117 = por %p115, %p116
    %p119 = scmp.ne.s32.totalorder %s104, %s118
    %p120 = scmp.eq.s32.totalorder %s21, 0
    %p121 = por %p119, %p120
    %s123 = sadd.s32 %s122, 1
    %p126 = scmp.eq.s32.totalorder %s15, 11
    %p127 = scmp.ne.s32.totalorder %s122, %s124
    %p128 = scmp.eq.s32.totalorder %s15, 0
    %p129 = por %p127, %p128
    %p130 = scmp.ne.s32.totalorder %s122, %s124
    %p131 = scmp.eq.s32.totalorder %s20, 11
    %p132 = por %p130, %p131
    %p133 = scmp.ne.s32.totalorder %s124, %s125
    %p134 = scmp.eq.s32.totalorder %s20, 0
    %p135 = por %p133, %p134
    %p136 = scmp.ne.s32.totalorder %s124, %s125
    %p137 = scmp.eq.s32.totalorder %s21, 11
    %p138 = por %p136, %p137
    %p140 = scmp.ne.s32.totalorder %s125, %s139
    %p141 = scmp.eq.s32.totalorder %s21, 0
    %p142 = por %p140, %p141
    %s144 = sadd.s32 %s143, 1
    %p147 = scmp.eq.s32.totalorder %s15, 11
    %p148 = scmp.ne.s32.totalorder %s143, %s145
    %p149 = scmp.eq.s32.totalorder %s15, 0
    %p150 = por %p148, %p149
    %p151 = scmp.ne.s32.totalorder %s143, %s145
    %p152 = scmp.eq.s32.totalorder %s20, 11
    %p153 = por %p151, %p152
    %p154 = scmp.ne.s32.totalorder %s145, %s146
    %p155 = scmp.eq.s32.totalorder %s20, 0
    %p156 = por %p154, %p155
    %p157 = scmp.ne.s32.totalorder %s145, %s146
    %p158 = scmp.eq.s32.totalorder %s21, 11
    %p159 = por %p157, %p158
    %p161 = scmp.ne.s32.totalorder %s146, %s160
    %p162 = scmp.eq.s32.totalorder %s21, 0
    %p163 = por %p161, %p162
    %s165 = sadd.s32 %s164, 1
    %p168 = scmp.eq.s32.totalorder %s15, 11
    %p169 = scmp.ne.s32.totalorder %s164, %s166
    %p170 = scmp.eq.s32.totalorder %s15, 0
    %p171 = por %p169, %p170
    %p172 = scmp.ne.s32.totalorder %s164, %s166
    %p173 = scmp.eq.s32.totalorder %s20, 11
    %p174 = por %p172, %p173
    %p175 = scmp.ne.s32.totalorder %s166, %s167
    %p176 = scmp.eq.s32.totalorder %s20, 0
    %p177 = por %p175, %p176
    %p178 = scmp.ne.s32.totalorder %s166, %s167
    %p179 = scmp.eq.s32.totalorder %s21, 11
    %p180 = por %p178, %p179
    %p182 = scmp.ne.s32.totalorder %s167, %s181
    %p183 = scmp.eq.s32.totalorder %s21, 0
    %p184 = por %p182, %p183
    %s185 = ssub.s32 %s15, %s22
    %p186 = scmp.eq.s32.totalorder %s185, 0
    %s188 = sadd.s32 %s187, 1
    %s189 = scalar_select %p186, %s187, %s188
    %p192 = pneg %p186
    %p193 = scmp.eq.s32.totalorder %s15, 11
    %p194 = por %p192, %p193
    %p195 = scmp.ne.s32.totalorder %s187, %s190
    %p196 = scmp.eq.s32.totalorder %s15, 0
    %p197 = por %p195, %p196
    %p198 = scmp.ne.s32.totalorder %s187, %s190
    %p199 = scmp.eq.s32.totalorder %s20, 11
    %p200 = por %p198, %p199
    %p201 = scmp.ne.s32.totalorder %s190, %s191
    %p202 = scmp.eq.s32.totalorder %s20, 0
    %p203 = por %p201, %p202
    %p204 = scmp.ne.s32.totalorder %s190, %s191
    %p205 = scmp.eq.s32.totalorder %s21, 11
    %p206 = por %p204, %p205
    %p208 = scmp.ne.s32.totalorder %s191, %s207
    %p209 = scmp.eq.s32.totalorder %s21, 0
    %p210 = por %p208, %p209
    %s211 = ssub.s32 %s15, %s22
    %p212 = scmp.eq.s32.totalorder %s211, 0
    %s214 = sadd.s32 %s213, 1
    %s215 = scalar_select %p212, %s213, %s214
    %p218 = pneg %p212
    %p219 = scmp.eq.s32.totalorder %s15, 11
    %p220 = por %p218, %p219
    %p221 = scmp.ne.s32.totalorder %s213, %s216
    %p222 = scmp.eq.s32.totalorder %s15, 0
    %p223 = por %p221, %p222
    %p224 = scmp.ne.s32.totalorder %s213, %s216
    %p225 = scmp.eq.s32.totalorder %s20, 11
    %p226 = por %p224, %p225
    %p227 = scmp.ne.s32.totalorder %s216, %s217
    %p228 = scmp.eq.s32.totalorder %s20, 0
    %p229 = por %p227, %p228
    %p230 = scmp.ne.s32.totalorder %s216, %s217
    %p231 = scmp.eq.s32.totalorder %s21, 11
    %p232 = por %p230, %p231
    %p234 = scmp.ne.s32.totalorder %s217, %s233
    %p235 = scmp.eq.s32.totalorder %s21, 0
    %p236 = por %p234, %p235
    %p237 = scmp.le.s32.totalorder 1, %s15
    %p238 = scmp.lt.s32.totalorder %s15, 13
    %p239 = pnand %p237, %p238
    %p240 = pneg %p239
    // Predicated region
    $region9: #{deeplab_forward.3} parent=5 // pred_check
      _
    $region10: #{deeplab_forward.3} parent=5 // pred_check_branch
      %242 = sbr.rel (%p239) target = $region12
    $region11: #{deeplab_forward.3} parent=5 // pred_region
      %s243 = ssub.s32 %s15, 1
      // Predicated region
      $region13: #{deeplab_forward.3} parent=11 // pred_check
        %p244 = pneg %p114
      $region14: #{deeplab_forward.3} parent=11 // pred_check_branch
        %246 = sbr.rel (%p244) target = $region16
      $region15: #{deeplab_forward.3} parent=11 // pred_region
        _
      $region16: #{deeplab_forward.3} parent=11 // pred_fallthru
        _
      // Predicated region
      $region17: #{deeplab_forward.3} parent=11 // pred_check
        %p247 = pneg %p135
      $region18: #{deeplab_forward.3} parent=11 // pred_check_branch
        %249 = sbr.rel (%p247) target = $region20
      $region19: #{deeplab_forward.3} parent=11 // pred_region
        _
      $region20: #{deeplab_forward.3} parent=11 // pred_fallthru
        _
      // Predicated region
      $region21: #{deeplab_forward.3} parent=11 // pred_check
        %p250 = pneg %p156
      $region22: #{deeplab_forward.3} parent=11 // pred_check_branch
        %252 = sbr.rel (%p250) target = $region24
      $region23: #{deeplab_forward.3} parent=11 // pred_region
        _
      $region24: #{deeplab_forward.3} parent=11 // pred_fallthru
        _
      // Predicated region
      $region25: #{deeplab_forward.3} parent=11 // pred_check
        %p253 = pneg %p177
      $region26: #{deeplab_forward.3} parent=11 // pred_check_branch
        %255 = sbr.rel (%p253) target = $region28
      $region27: #{deeplab_forward.3} parent=11 // pred_region
        _
      $region28: #{deeplab_forward.3} parent=11 // pred_fallthru
        _
    $region12: #{deeplab_forward.3} parent=5 // pred_fallthru
      _
    %p256 = scmp.lt.s32.totalorder %s15, 12
    // Predicated region
    $region29: #{deeplab_forward.3} parent=5 // pred_check
      %p257 = pneg %p256
    $region30: #{deeplab_forward.3} parent=5 // pred_check_branch
      %259 = sbr.rel (%p257) target = $region32
    $region31: #{deeplab_forward.3} parent=5 // pred_region
      // Predicated region
      $region33: #{deeplab_forward.3} parent=31 // pred_check
        %p260 = pneg %p35
      $region34: #{deeplab_forward.3} parent=31 // pred_check_branch
        %262 = sbr.rel (%p260) target = $region36
      $region35: #{deeplab_forward.3} parent=31 // pred_region
        %p263 = scmp.lt.s32.totalorder %s15, 11
        %s264 = scalar_select %p263, %s15, 11
        %s265 = smul.addr %s264, 4
        %s266 = scalar_lea.vmem %s0, %s265
      $region36: #{deeplab_forward.3} parent=31 // pred_fallthru
        _
      // Predicated region
      $region37: #{deeplab_forward.3} parent=31 // pred_check
        %p267 = pneg %p61
      $region38: #{deeplab_forward.3} parent=31 // pred_check_branch
        %269 = sbr.rel (%p267) target = $region40
      $region39: #{deeplab_forward.3} parent=31 // pred_region
        %p270 = scmp.lt.s32.totalorder %s15, 11
        %s271 = scalar_select %p270, %s15, 11
        %s272 = smul.addr %s271, 4
        %s273 = scalar_lea.vmem %s1, %s272
      $region40: #{deeplab_forward.3} parent=31 // pred_fallthru
        _
      // Predicated region
      $region41: #{deeplab_forward.3} parent=31 // pred_check
        %p274 = pneg %p87
      $region42: #{deeplab_forward.3} parent=31 // pred_check_branch
        %276 = sbr.rel (%p274) target = $region44
      $region43: #{deeplab_forward.3} parent=31 // pred_region
        %p277 = scmp.lt.s32.totalorder %s15, 11
        %s278 = scalar_select %p277, %s15, 11
        %s279 = smul.addr %s278, 2
        %s280 = scalar_lea.vmem %s2, %s279
      $region44: #{deeplab_forward.3} parent=31 // pred_fallthru
        _
    $region32: #{deeplab_forward.3} parent=5 // pred_fallthru
      _
    %p281 = scmp.le.s32.totalorder 1, %s15
    %p282 = scmp.lt.s32.totalorder %s15, 13
    %p283 = pnand %p281, %p282
    %p284 = pneg %p283
    // Predicated region
    $region45: #{deeplab_forward.3} parent=5 // pred_check
      _
    $region46: #{deeplab_forward.3} parent=5 // pred_check_branch
      %286 = sbr.rel (%p283) target = $region48
    $region47: #{deeplab_forward.3} parent=5 // pred_region
      %s287 = ssub.s32 %s15, 1
      %p288 = scmp.lt.s32.totalorder %s20, 11
      %s289 = scalar_select %p288, %s20, 11
      %s290 = smul.addr %s289, 4
      %s291 = scalar_lea.vmem %s0, %s290
      %p292 = pneg %p41
      %p293 = pneg %p38
      %p294 = scmp.lt.s32.totalorder %s20, 11
      %s295 = scalar_select %p294, %s20, 11
      %s296 = smul.addr %s295, 4
      %s297 = scalar_lea.vmem %s1, %s296
      %p298 = pneg %p67
      %p299 = pneg %p64
      %p300 = scmp.lt.s32.totalorder %s20, 11
      %s301 = scalar_select %p300, %s20, 11
      %s302 = smul.addr %s301, 2
      %s303 = scalar_lea.vmem %s2, %s302
      %p304 = pneg %p93
      %p305 = pneg %p90
      %p306 = pneg %p114
      %p307 = pneg %p111
      %p308 = pneg %p135
      %p309 = pneg %p132
      %p310 = pneg %p156
      %p311 = pneg %p153
      %p312 = pneg %p177
      %p313 = pneg %p174
      %p314 = pneg %p203
      %p315 = pneg %p200
      %p316 = scmp.lt.s32.totalorder %s20, 11
      %s317 = scalar_select %p316, %s20, 11
      %s318 = smul.addr %s317, 4
      %s319 = scalar_lea.vmem %s7, %s318
      %p320 = pneg %p229
      %p321 = pneg %p226
      %p322 = scmp.lt.s32.totalorder %s20, 11
      %s323 = scalar_select %p322, %s20, 11
      %s324 = smul.addr %s323, 4
      %s325 = scalar_lea.vmem %s8, %s324
      %p326 = scmp.lt.s32.totalorder %s20, 11
      %s327 = scalar_select %p326, %s20, 11
      %s328 = smul.addr %s327, 4
      %s329 = scalar_lea.vmem %s0, %s328
      %p330 = scmp.lt.s32.totalorder %s20, 11
      %s331 = scalar_select %p330, %s20, 11
      %s332 = smul.addr %s331, 4
      %s333 = scalar_lea.vmem %s1, %s332
      %p334 = scmp.lt.s32.totalorder %s20, 11
      %s335 = scalar_select %p334, %s20, 11
      %s336 = smul.addr %s335, 2
      %s337 = scalar_lea.vmem %s2, %s336
      %p338 = scmp.lt.s32.totalorder %s20, 11
      %s339 = scalar_select %p338, %s20, 11
      %s340 = smul.addr %s339, 4
      %s341 = scalar_lea.vmem %s7, %s340
      %p342 = scmp.lt.s32.totalorder %s20, 11
      %s343 = scalar_select %p342, %s20, 11
      %s344 = smul.addr %s343, 4
      %s345 = scalar_lea.vmem %s8, %s344
      %v346 = vld [vmem:[%s329] sm:$0xf]
      %v347 = vld [vmem:[%s333] sm:$0x7]
      %v348 = vld [vmem:[%s4] sm:$0x7]
      %vm349 = vcmask 23552
      %v351 = vsel %vm349, %v347, 0
      %vm353 = vcmask 1042432
      %v355 = vsel %vm353, %v348, 0
      %357 = vmatprep.subr.mxu0 0.0
      %358 = vmatpush1.msra.mxu0 %v355
      %359 = vmatprep.subr.mxu0 0.0
      %360 = vmatpush1.msra.mxu0 0.0
      %361 = vmatprep.subr.mxu0 0.0
      %362 = vmatpush1.msra.mxu0 0.0
      %363 = vmatprep.subr.mxu0 0.0
      %364 = vmatpush1.msra.mxu0 0.0
      %365 = vmatprep.subr.mxu0 0.0
      %366 = vmatpush1.msra.mxu0 0.0
      %367 = vmatprep.subr.mxu0 0.0
      %368 = vmatpush1.msra.mxu0 0.0
      %369 = vmatprep.subr.mxu0 0.0
      %370 = vmatpush1.msra.mxu0 0.0
      %371 = vmatprep.subr.mxu0 0.0
      %372 = vmatpush1.msra.mxu0 0.0
      %373 = vmatprep.subr.mxu0 0.0
      %374 = vmatpush1.msra.mxu0 0.0
      %375 = vmatprep.subr.mxu0 0.0
      %376 = vmatpush1.msra.mxu0 0.0
      %377 = vmatprep.subr.mxu0 0.0
      %378 = vmatpush1.msra.mxu0 0.0
      %379 = vmatprep.subr.mxu0 0.0
      %380 = vmatpush1.msra.mxu0 0.0
      %381 = vmatprep.subr.mxu0 0.0
      %382 = vmatpush1.msra.mxu0 0.0
      %383 = vmatprep.subr.mxu0 0.0
      %384 = vmatpush1.msra.mxu0 0.0
      %385 = vmatprep.subr.mxu0 0.0
      %386 = vmatpush1.msra.mxu0 0.0
      %387 = vmatprep.subr.mxu0 0.0
      %388 = vmatpush1.msra.mxu0 0.0
      %389 = vmatprep.subr.mxu0 0.0
      %390 = vmatpush1.msra.mxu0 0.0
      %391 = vmatprep.subr.mxu0 0.0
      %392 = vmatpush1.msra.mxu0 0.0
      %393 = vmatprep.subr.mxu0 0.0
      %394 = vmatpush1.msra.mxu0 0.0
      %395 = vmatprep.subr.mxu0 0.0
      %396 = vmatpush1.msra.mxu0 0.0
      %397 = vmatprep.subr.mxu0 0.0
      %398 = vmatpush1.msra.mxu0 0.0
      %399 = vmatprep.subr.mxu0 0.0
      %400 = vmatpush1.msra.mxu0 0.0
      %401 = vmatprep.subr.mxu0 0.0
      %402 = vmatpush1.msra.mxu0 0.0
      %403 = vmatprep.subr.mxu0 0.0
      %404 = vmatpush1.msra.mxu0 0.0
      %405 = vmatprep.subr.mxu0 0.0
      %406 = vmatpush1.msra.mxu0 0.0
      %407 = vmatprep.subr.mxu0 0.0
      %408 = vmatpush1.msra.mxu0 0.0
      %409 = vmatprep.subr.mxu0 0.0
      %410 = vmatpush1.msra.mxu0 0.0
      %411 = vmatprep.subr.mxu0 0.0
      %412 = vmatpush1.msra.mxu0 0.0
      %413 = vmatprep.subr.mxu0 0.0
      %414 = vmatpush1.msra.mxu0 0.0
      %415 = vmatprep.subr.mxu0 0.0
      %416 = vmatpush1.msra.mxu0 0.0
      %417 = vmatprep.subr.mxu0 0.0
      %418 = vmatpush1.msra.mxu0 0.0
      %419 = vmatprep.subr.mxu0 0.0
      %420 = vmatpush1.msra.mxu0 0.0
      %421 = vmatprep.mubr.f32.mxu0 0.0
      %422 = vmatmul.mubr.f32.gmra.mrb[0].mxu0 %v351
      %v423 = vpop.f32.mrb[0].mxu0
      %v424 = vadd.f32 0.0, %v423
      %v425 = vpop.f32.mrb[0].mxu0
      %426 = vdwg.mxu0
      %v427 = vld [vmem:[%s3] sm:$0xf]
      %v429 = vsel %vm349, %v427, 0
      %v432 = vsel %vm353, %v424, 0
      %434 = vmatprep.subr.mxu0 0.0
      %435 = vmatpush1.msra.mxu0 %v432
      %436 = vmatprep.subr.mxu0 0.0
      %437 = vmatpush1.msra.mxu0 0.0
      %438 = vmatprep.subr.mxu0 0.0
      %439 = vmatpush1.msra.mxu0 0.0
      %440 = vmatprep.subr.mxu0 0.0
      %441 = vmatpush1.msra.mxu0 0.0
      %442 = vmatprep.subr.mxu0 0.0
      %443 = vmatpush1.msra.mxu0 0.0
      %444 = vmatprep.subr.mxu0 0.0
      %445 = vmatpush1.msra.mxu0 0.0
      %446 = vmatprep.subr.mxu0 0.0
      %447 = vmatpush1.msra.mxu0 0.0
      %448 = vmatprep.subr.mxu0 0.0
      %449 = vmatpush1.msra.mxu0 0.0
      %450 = vmatprep.subr.mxu0 0.0
      %451 = vmatpush1.msra.mxu0 0.0
      %452 = vmatprep.subr.mxu0 0.0
      %453 = vmatpush1.msra.mxu0 0.0
      %454 = vmatprep.subr.mxu0 0.0
      %455 = vmatpush1.msra.mxu0 0.0
      %456 = vmatprep.subr.mxu0 0.0
      %457 = vmatpush1.msra.mxu0 0.0
      %458 = vmatprep.subr.mxu0 0.0
      %459 = vmatpush1.msra.mxu0 0.0
      %460 = vmatprep.subr.mxu0 0.0
      %461 = vmatpush1.msra.mxu0 0.0
      %462 = vmatprep.subr.mxu0 0.0
      %463 = vmatpush1.msra.mxu0 0.0
      %464 = vmatprep.subr.mxu0 0.0
      %465 = vmatpush1.msra.mxu0 0.0
      %466 = vmatprep.subr.mxu0 0.0
      %467 = vmatpush1.msra.mxu0 0.0
      %468 = vmatprep.subr.mxu0 0.0
      %469 = vmatpush1.msra.mxu0 0.0
      %470 = vmatprep.subr.mxu0 0.0
      %471 = vmatpush1.msra.mxu0 0.0
      %472 = vmatprep.subr.mxu0 0.0
      %473 = vmatpush1.msra.mxu0 0.0
      %474 = vmatprep.subr.mxu0 0.0
      %475 = vmatpush1.msra.mxu0 0.0
      %476 = vmatprep.subr.mxu0 0.0
      %477 = vmatpush1.msra.mxu0 0.0
      %478 = vmatprep.subr.mxu0 0.0
      %479 = vmatpush1.msra.mxu0 0.0
      %480 = vmatprep.subr.mxu0 0.0
      %481 = vmatpush1.msra.mxu0 0.0
      %482 = vmatprep.subr.mxu0 0.0
      %483 = vmatpush1.msra.mxu0 0.0
      %484 = vmatprep.subr.mxu0 0.0
      %485 = vmatpush1.msra.mxu0 0.0
      %486 = vmatprep.subr.mxu0 0.0
      %487 = vmatpush1.msra.mxu0 0.0
      %488 = vmatprep.subr.mxu0 0.0
      %489 = vmatpush1.msra.mxu0 0.0
      %490 = vmatprep.subr.mxu0 0.0
      %491 = vmatpush1.msra.mxu0 0.0
      %492 = vmatprep.subr.mxu0 0.0
      %493 = vmatpush1.msra.mxu0 0.0
      %494 = vmatprep.subr.mxu0 0.0
      %495 = vmatpush1.msra.mxu0 0.0
      %496 = vmatprep.subr.mxu0 0.0
      %497 = vmatpush1.msra.mxu0 0.0
      %498 = vmatprep.mubr.f32.mxu0 0.0
      %499 = vmatmul.mubr.f32.gmra.mrb[0].mxu0 %v429
      %v500 = vpop.f32.mrb[0].mxu0
      %v501 = vadd.f32 0.0, %v500
      %v502 = vpop.f32.mrb[0].mxu0
      %503 = vdwg.mxu0
      %v504 = vld [vmem:[%s337] sm:$0x3]
      %v505 = vld [vmem:[%s6] sm:$0x3]
      %vm506 = vcmask 15360
      %v508 = vsel %vm506, %v504, 0
      %vm510 = vcmask 1041408
      %v512 = vsel %vm510, %v505, 0
      %514 = vmatprep.subr.mxu0 0.0
      %515 = vmatpush1.msra.mxu0 %v512
      %516 = vmatprep.subr.mxu0 0.0
      %517 = vmatpush1.msra.mxu0 0.0
      %518 = vmatprep.subr.mxu0 0.0
      %519 = vmatpush1.msra.mxu0 0.0
      %520 = vmatprep.subr.mxu0 0.0
      %521 = vmatpush1.msra.mxu0 0.0
      %522 = vmatprep.subr.mxu0 0.0
      %523 = vmatpush1.msra.mxu0 0.0
      %524 = vmatprep.subr.mxu0 0.0
      %525 = vmatpush1.msra.mxu0 0.0
      %526 = vmatprep.subr.mxu0 0.0
      %527 = vmatpush1.msra.mxu0 0.0
      %528 = vmatprep.subr.mxu0 0.0
      %529 = vmatpush1.msra.mxu0 0.0
      %530 = vmatprep.subr.mxu0 0.0
      %531 = vmatpush1.msra.mxu0 0.0
      %532 = vmatprep.subr.mxu0 0.0
      %533 = vmatpush1.msra.mxu0 0.0
      %534 = vmatprep.subr.mxu0 0.0
      %535 = vmatpush1.msra.mxu0 0.0
      %536 = vmatprep.subr.mxu0 0.0
      %537 = vmatpush1.msra.mxu0 0.0
      %538 = vmatprep.subr.mxu0 0.0
      %539 = vmatpush1.msra.mxu0 0.0
      %540 = vmatprep.subr.mxu0 0.0
      %541 = vmatpush1.msra.mxu0 0.0
      %542 = vmatprep.subr.mxu0 0.0
      %543 = vmatpush1.msra.mxu0 0.0
      %544 = vmatprep.subr.mxu0 0.0
      %545 = vmatpush1.msra.mxu0 0.0
      %546 = vmatprep.subr.mxu0 0.0
      %547 = vmatpush1.msra.mxu0 0.0
      %548 = vmatprep.subr.mxu0 0.0
      %549 = vmatpush1.msra.mxu0 0.0
      %550 = vmatprep.subr.mxu0 0.0
      %551 = vmatpush1.msra.mxu0 0.0
      %552 = vmatprep.subr.mxu0 0.0
      %553 = vmatpush1.msra.mxu0 0.0
      %554 = vmatprep.subr.mxu0 0.0
      %555 = vmatpush1.msra.mxu0 0.0
      %556 = vmatprep.subr.mxu0 0.0
      %557 = vmatpush1.msra.mxu0 0.0
      %558 = vmatprep.subr.mxu0 0.0
      %559 = vmatpush1.msra.mxu0 0.0
      %560 = vmatprep.subr.mxu0 0.0
      %561 = vmatpush1.msra.mxu0 0.0
      %562 = vmatprep.subr.mxu0 0.0
      %563 = vmatpush1.msra.mxu0 0.0
      %564 = vmatprep.subr.mxu0 0.0
      %565 = vmatpush1.msra.mxu0 0.0
      %566 = vmatprep.subr.mxu0 0.0
      %567 = vmatpush1.msra.mxu0 0.0
      %568 = vmatprep.subr.mxu0 0.0
      %569 = vmatpush1.msra.mxu0 0.0
      %570 = vmatprep.subr.mxu0 0.0
      %571 = vmatpush1.msra.mxu0 0.0
      %572 = vmatprep.subr.mxu0 0.0
      %573 = vmatpush1.msra.mxu0 0.0
      %574 = vmatprep.subr.mxu0 0.0
      %575 = vmatpush1.msra.mxu0 0.0
      %576 = vmatprep.subr.mxu0 0.0
      %577 = vmatpush1.msra.mxu0 0.0
      %578 = vmatprep.mubr.f32.mxu0 0.0
      %579 = vmatmul.mubr.f32.gmra.mrb[0].mxu0 %v508
      %v580 = vpop.f32.mrb[0].mxu0
      %v581 = vadd.f32 0.0, %v580
      %v582 = vpop.f32.mrb[0].mxu0
      %583 = vdwg.mxu0
      %v584 = vld [vmem:[%s5] sm:$0xf]
      %v586 = vsel %vm506, %v584, 0
      %v589 = vsel %vm510, %v581, 0
      %591 = vmatprep.subr.mxu0 0.0
      %592 = vmatpush1.msra.mxu0 %v589
      %593 = vmatprep.subr.mxu0 0.0
      %594 = vmatpush1.msra.mxu0 0.0
      %595 = vmatprep.subr.mxu0 0.0
      %596 = vmatpush1.msra.mxu0 0.0
      %597 = vmatprep.subr.mxu0 0.0
      %598 = vmatpush1.msra.mxu0 0.0
      %599 = vmatprep.subr.mxu0 0.0
      %600 = vmatpush1.msra.mxu0 0.0
      %601 = vmatprep.subr.mxu0 0.0
      %602 = vmatpush1.msra.mxu0 0.0
      %603 = vmatprep.subr.mxu0 0.0
      %604 = vmatpush1.msra.mxu0 0.0
      %605 = vmatprep.subr.mxu0 0.0
      %606 = vmatpush1.msra.mxu0 0.0
      %607 = vmatprep.subr.mxu0 0.0
      %608 = vmatpush1.msra.mxu0 0.0
      %609 = vmatprep.subr.mxu0 0.0
      %610 = vmatpush1.msra.mxu0 0.0
      %611 = vmatprep.subr.mxu0 0.0
      %612 = vmatpush1.msra.mxu0 0.0
      %613 = vmatprep.subr.mxu0 0.0
      %614 = vmatpush1.msra.mxu0 0.0
      %615 = vmatprep.subr.mxu0 0.0
      %616 = vmatpush1.msra.mxu0 0.0
      %617 = vmatprep.subr.mxu0 0.0
      %618 = vmatpush1.msra.mxu0 0.0
      %619 = vmatprep.subr.mxu0 0.0
      %620 = vmatpush1.msra.mxu0 0.0
      %621 = vmatprep.subr.mxu0 0.0
      %622 = vmatpush1.msra.mxu0 0.0
      %623 = vmatprep.subr.mxu0 0.0
      %624 = vmatpush1.msra.mxu0 0.0
      %625 = vmatprep.subr.mxu0 0.0
      %626 = vmatpush1.msra.mxu0 0.0
      %627 = vmatprep.subr.mxu0 0.0
      %628 = vmatpush1.msra.mxu0 0.0
      %629 = vmatprep.subr.mxu0 0.0
      %630 = vmatpush1.msra.mxu0 0.0
      %631 = vmatprep.subr.mxu0 0.0
      %632 = vmatpush1.msra.mxu0 0.0
      %633 = vmatprep.subr.mxu0 0.0
      %634 = vmatpush1.msra.mxu0 0.0
      %635 = vmatprep.subr.mxu0 0.0
      %636 = vmatpush1.msra.mxu0 0.0
      %637 = vmatprep.subr.mxu0 0.0
      %638 = vmatpush1.msra.mxu0 0.0
      %639 = vmatprep.subr.mxu0 0.0
      %640 = vmatpush1.msra.mxu0 0.0
      %641 = vmatprep.subr.mxu0 0.0
      %642 = vmatpush1.msra.mxu0 0.0
      %643 = vmatprep.subr.mxu0 0.0
      %644 = vmatpush1.msra.mxu0 0.0
      %645 = vmatprep.subr.mxu0 0.0
      %646 = vmatpush1.msra.mxu0 0.0
      %647 = vmatprep.subr.mxu0 0.0
      %648 = vmatpush1.msra.mxu0 0.0
      %649 = vmatprep.subr.mxu0 0.0
      %650 = vmatpush1.msra.mxu0 0.0
      %651 = vmatprep.subr.mxu0 0.0
      %652 = vmatpush1.msra.mxu0 0.0
      %653 = vmatprep.subr.mxu0 0.0
      %654 = vmatpush1.msra.mxu0 0.0
      %655 = vmatprep.mubr.f32.mxu0 0.0
      %656 = vmatmul.mubr.f32.gmra.mrb[0].mxu0 %v586
      %v657 = vpop.f32.mrb[0].mxu0
      %v658 = vadd.f32 0.0, %v657
      %v659 = vpop.f32.mrb[0].mxu0
      %660 = vdwg.mxu0
      %vm661 = vcmask 27648
      %662 = vst.msk [vmem:[%s341] sm:$0xf] %vm661, %v501
      %v663 = vmax.f32 %v346, %v501
      %v664 = vmax.f32 %v663, %v658
      %665 = vst.msk [vmem:[%s345] sm:$0xf] %vm661, %v664
      %p666 = scmp.lt.s32.totalorder %s20, 11
      %s667 = scalar_select %p666, %s20, 11
      %s668 = smul.addr %s667, 4
      %s669 = scalar_lea.vmem %s7, %s668
      %p670 = scmp.lt.s32.totalorder %s20, 11
      %s671 = scalar_select %p670, %s20, 11
      %s672 = smul.addr %s671, 4
      %s673 = scalar_lea.vmem %s8, %s672
      // Predicated region
      $region49: #{deeplab_forward.3} parent=47 // pred_check
        %p674 = pneg %p200
      $region50: #{deeplab_forward.3} parent=47 // pred_check_branch
        %676 = sbr.rel (%p674) target = $region52
      $region51: #{deeplab_forward.3} parent=47 // pred_region
        _
      $region52: #{deeplab_forward.3} parent=47 // pred_fallthru
        _
      // Predicated region
      $region53: #{deeplab_forward.3} parent=47 // pred_check
        %p677 = pneg %p226
      $region54: #{deeplab_forward.3} parent=47 // pred_check_branch
        %679 = sbr.rel (%p677) target = $region56
      $region55: #{deeplab_forward.3} parent=47 // pred_region
        _
      $region56: #{deeplab_forward.3} parent=47 // pred_fallthru
        _
    $region48: #{deeplab_forward.3} parent=5 // pred_fallthru
      _
    %p680 = scmp.le.s32.totalorder 2, %s15
    // Predicated region
    $region57: #{deeplab_forward.3} parent=5 // pred_check
      %p681 = pneg %p680
    $region58: #{deeplab_forward.3} parent=5 // pred_check_branch
      %683 = sbr.rel (%p681) target = $region60
    $region59: #{deeplab_forward.3} parent=5 // pred_region
      %s684 = ssub.s32 %s15, 2
      // Predicated region
      $region61: #{deeplab_forward.3} parent=59 // pred_check
        %p685 = pneg %p206
      $region62: #{deeplab_forward.3} parent=59 // pred_check_branch
        %687 = sbr.rel (%p685) target = $region64
      $region63: #{deeplab_forward.3} parent=59 // pred_region
        %p688 = scmp.lt.s32.totalorder %s21, 11
        %s689 = scalar_select %p688, %s21, 11
        %s690 = smul.addr %s689, 4
        %s691 = scalar_lea.vmem %s7, %s690
      $region64: #{deeplab_forward.3} parent=59 // pred_fallthru
        _
      // Predicated region
      $region65: #{deeplab_forward.3} parent=59 // pred_check
        %p692 = pneg %p232
      $region66: #{deeplab_forward.3} parent=59 // pred_check_branch
        %694 = sbr.rel (%p692) target = $region68
      $region67: #{deeplab_forward.3} parent=59 // pred_region
        %p695 = scmp.lt.s32.totalorder %s21, 11
        %s696 = scalar_select %p695, %s21, 11
        %s697 = smul.addr %s696, 4
        %s698 = scalar_lea.vmem %s8, %s697
      $region68: #{deeplab_forward.3} parent=59 // pred_fallthru
        _
    $region60: #{deeplab_forward.3} parent=5 // pred_fallthru
      _
  $region6: #{deeplab_forward.3} parent=0 // loop_footer
    %s19 = sadd.s32 1, %s15
  $region7: #{deeplab_forward.3} parent=0 // loop_footer_branch
    %14 = sbr.rel target = $region3
  $region8: #{deeplab_forward.3} parent=0 // loop_exit
    _

</llo_original>
